<compile_context>
chip_gen: v5e
topology: v5e:2x2
jax: 0.10.0
libtpu: 0.0.40
codegen_flags: <defaults>
</compile_context>

<pallas_src>
import math
from functools import partial

import jax
import jax.numpy as jnp
from jax import lax
from jax.experimental import pallas as pl
from jax.experimental.pallas import tpu as pltpu


def _round_up(x, m):
    return (x + m - 1) // m * m


def _margin_cosine_kernel(sm, x_ref, w_ref, rs_ref, cs_ref, lab_ref, out_ref):
    j = pl.program_id(0)                      # class-tile index (leading grid axis)
    tn = out_ref.shape[1]

    # MXU: bf16 x bf16 -> f32, contracting the feature dim of both operands
    # directly (no w.T transpose).
    ip = lax.dot_general(
        x_ref[...], w_ref[...],
        dimension_numbers=(((1,), (1,)), ((), ())),
        preferred_element_type=jnp.float32)   # (TM, TN) f32

    # Rank-1 scaling with precomputed per-row / per-class factors (s folded into
    # the row factor).  Pure broadcast VPU multiplies, no in-kernel reductions.
    scaled = ip * rs_ref[...] * cs_ref[...]   # (TM,1) * (1,TN) broadcast

    # One-hot margin: shift the label into tile-local coordinates and let the
    # compare against a (1, TN) iota broadcast.
    lab_local = lab_ref[...] - j * tn                          # (TM, 1) int32
    col = lax.broadcasted_iota(jnp.int32, (1, tn), 1)          # (1, TN)
    margin = jnp.where(col == lab_local, jnp.float32(sm), jnp.float32(0.0))

    out_ref[...] = (scaled - margin).astype(out_ref.dtype)


def _vmem_budget():
    """Generation-aware planning budget and physical capacity."""
    cap = 64 * 1024 * 1024                        # conservative (v7x) fallback
    try:
        info = pltpu.get_tpu_info()
        cap = int(getattr(info, "vmem_capacity_bytes", cap))
    except Exception:
        pass
    budget = min(int(cap * 0.5), 64 * 1024 * 1024)
    return budget, cap


def _vmem_need(tm, tn, d_lanes):
    """Double-buffered working set INCLUDING in-kernel f32 temporaries."""
    return (2 * tn * d_lanes * 2       # bf16 weight tile
            + 2 * tm * d_lanes * 2     # bf16 x tile
            + 2 * tm * tn * 4          # f32 output tile
            + 2 * tm * 128 * 4         # f32 row_scale (lane-padded)
            + 2 * 8 * tn * 4           # f32 inv_w (sublane-padded)
            + 2 * tm * 128 * 4         # int32 labels (lane-padded)
            + 3 * tm * tn * 4)         # f32 temporaries: ip / scaled / mask


def _choose_tiles(B, N, D, budget):
    """Pick (TM, TN) minimizing a crude roofline time model under the VMEM budget,
    preferring tiles that divide the problem (no post-kernel slice copy)."""
    b8 = _round_up(B, 8)
    n128 = _round_up(N, 128)
    d_lanes = max(_round_up(D, 128), 128)

    base = [512, 384, 256, 192, 128, 64, 32, 16, 8]
    # bf16 x tile: keep the sublane dim a multiple of 16 unless it is the full batch.
    tm_cands = sorted({t for t in base + [b8]
                       if t <= b8 and (t % 16 == 0 or t == b8)}, reverse=True)
    tn_cands = list(range(min(n128, 4096), 0, -128))   # multiples of 128, descending

    best = None
    for tn in tn_cands:
        for tm in tm_cands:
            need = _vmem_need(tm, tn, d_lanes)
            minimal = (tm == tm_cands[-1] and tn == 128)
            if need > budget and not minimal:
                continue
            n_pad = _round_up(n128, tn)
            b_pad = _round_up(b8, tm)
            slice_copy = (b_pad != B) or (n_pad != N)
            n_steps = (n_pad // tn) * (b_pad // tm)
            # HBM traffic: weights once, x re-streamed per class tile, output once,
            # plus the XLA slice copy if padding forces one.
            bytes_moved = (n_pad * D * 2
                           + b_pad * D * 2 * (n_pad // tn)
                           + b_pad * n_pad * 4)
            if slice_copy:
                bytes_moved += 2 * B * N * 4
            t = max(bytes_moved / 1.2e12,
                    2.0 * b_pad * n_pad * D / 4.0e14) + n_steps * 0.35e-6
            if best is None or t < best[0]:
                best = (t, tm, tn, b_pad, n_pad, need)
    _, tm, tn, b_pad, n_pad, need = best
    return tm, tn, b_pad, n_pad, need


def margin_cosine_product(x, weight, label, *, s=30.0, m=0.4, eps=1e-8):
    """x: (B, in_features) f32, weight: (out_features, in_features) f32,
    label: (B,) int, returns (B, out_features) f32 = s * (cosine - one_hot * m)."""
    B, D = x.shape
    N, D2 = weight.shape
    assert D == D2

    budget, cap = _vmem_budget()
    TM, TN, B_pad, N_pad, need = _choose_tiles(B, N, D, budget)

    # --- hoisted rank-1 norm work (O((B+N)*D), once, outside the grid) -------
    # bf16 weights halve HBM traffic and feed the MXU at its native rate; the
    # class norm is taken from the bf16 weights (what the matmul actually sees).
    w_bf16 = weight.astype(jnp.bfloat16)
    x_norm = jnp.sqrt(jnp.sum(x * x, axis=1, keepdims=True))            # (B,1) f32
    row_scale = (jnp.float32(s) / jnp.maximum(x_norm, eps)).astype(jnp.float32)
    w_norm = jnp.sqrt(jnp.sum(jnp.square(w_bf16.astype(jnp.float32)), axis=1))
    inv_w = (1.0 / jnp.maximum(w_norm, eps)).reshape(1, N).astype(jnp.float32)
    # NOTE: clamping each norm at eps (vs. the reference's clamp on the product)
    # differs only for degenerate near-zero-norm rows/classes.

    x_bf16 = x.astype(jnp.bfloat16)
    lab2d = label.reshape(B, 1).astype(jnp.int32)

    # --- padding (zero-padded rows/classes produce zeros and are sliced off) --
    if B_pad != B:
        x_bf16 = jnp.pad(x_bf16, ((0, B_pad - B), (0, 0)))
        row_scale = jnp.pad(row_scale, ((0, B_pad - B), (0, 0)))
        lab2d = jnp.pad(lab2d, ((0, B_pad - B), (0, 0)))
    if N_pad != N:
        w_bf16 = jnp.pad(w_bf16, ((0, N_pad - N), (0, 0)))
        inv_w = jnp.pad(inv_w, ((0, 0), (0, N_pad - N)))

    # Class-leading grid: weight tile resident across the inner batch loop
    # (streamed from HBM once) and v7x's megacore split shards the class axis.
    grid = (N_pad // TN, B_pad // TM)
    vmem_limit = int(min(max(need + (8 << 20), 32 << 20), int(cap * 0.9)))

    kernel = partial(_margin_cosine_kernel, float(s) * float(m))

    out = pl.pallas_call(
        kernel,
        out_shape=jax.ShapeDtypeStruct((B_pad, N_pad), jnp.float32),
        grid_spec=pltpu.PrefetchScalarGridSpec(
            num_scalar_prefetch=0,
            grid=grid,
            in_specs=[
                pl.BlockSpec((TM, D), lambda j, i: (i, 0)),   # x (bf16)
                pl.BlockSpec((TN, D), lambda j, i: (j, 0)),   # weights (bf16, resident)
                pl.BlockSpec((TM, 1), lambda j, i: (i, 0)),   # s / ||x||  (f32)
                pl.BlockSpec((1, TN), lambda j, i: (0, j)),   # 1 / ||w||  (f32)
                pl.BlockSpec((TM, 1), lambda j, i: (i, 0)),   # labels (int32)
            ],
            out_specs=pl.BlockSpec((TM, TN), lambda j, i: (i, j)),
        ),
        compiler_params=pltpu.CompilerParams(
            dimension_semantics=("parallel", "parallel"),
            vmem_limit_bytes=vmem_limit,
        ),
    )(x_bf16, w_bf16, row_scale, inv_w, lab2d)

    if B_pad != B or N_pad != N:
        out = out[:B, :N]   # only pays the copy when the problem isn't tile-aligned
    return out


def _xavier_uniform(key, out_features, in_features):
    # matches torch.nn.init.xavier_uniform_ for a (out, in) weight
    bound = math.sqrt(6.0 / (in_features + out_features))
    return jax.random.uniform(
        key, (out_features, in_features), dtype=jnp.float32,
        minval=-bound, maxval=bound)


if __name__ == "__main__":
    B = 8
    in_features = 32
    out_features = 384   # 3*128: class tiling with no output padding / slice copy

    key = jax.random.PRNGKey(0)
    kx, kw, kl = jax.random.split(key, 3)

    x = jax.random.normal(kx, (B, in_features), dtype=jnp.float32)
    weight = _xavier_uniform(kw, out_features, in_features)
    label = jax.random.randint(kl, (B,), 0, out_features, dtype=jnp.int32)

    out = margin_cosine_product(x, weight, label, s=30.0, m=0.4)
    out = jax.block_until_ready(out)
    assert out.shape == (B, out_features)

    # Reference with matching matmul precision (bf16 operands, f32 accumulate).
    xb = x.astype(jnp.bfloat16)
    wb = weight.astype(jnp.bfloat16)
    ip = lax.dot_general(xb, wb,
                         dimension_numbers=(((1,), (1,)), ((), ())),
                         preferred_element_type=jnp.float32)
    w1 = jnp.linalg.norm(x, axis=1)
    w2 = jnp.linalg.norm(wb.astype(jnp.float32), axis=1)
    cosine = ip / jnp.maximum(jnp.outer(w1, w2), 1e-8)
    one_hot = jax.nn.one_hot(label, out_features, dtype=jnp.float32)
    ref = 30.0 * (cosine - one_hot * 0.4)
    assert jnp.allclose(out, ref, atol=1e-3, rtol=1e-3), \
        float(jnp.max(jnp.abs(out - ref)))

    # Loose sanity check against the exact f32 math of the PyTorch module
    # (bf16 matmul operands bound the deviation at s=30).
    ip32 = x @ weight.T
    cos32 = ip32 / jnp.maximum(
        jnp.outer(jnp.linalg.norm(x, axis=1), jnp.linalg.norm(weight, axis=1)),
        1e-8)
    ref32 = 30.0 * (cos32 - one_hot * 0.4)
    assert float(jnp.max(jnp.abs(out - ref32))) < 1.0

    print("KERNEL_OK")
</pallas_src>

<mosaic_0001>
module attributes {stable_mosaic.version = 11 : i64} {
  func.func @_margin_cosine_kernel(%arg0: i32, %arg1: i32, %arg2: memref<8x32xbf16, #tpu.memory_space<vmem>>, %arg3: memref<384x32xbf16, #tpu.memory_space<vmem>>, %arg4: memref<8x1xf32, #tpu.memory_space<vmem>>, %arg5: memref<1x384xf32, #tpu.memory_space<vmem>>, %arg6: memref<8x1xi32, #tpu.memory_space<vmem>>, %arg7: memref<8x384xf32, #tpu.memory_space<vmem>>) attributes {dimension_semantics = [#tpu.dimension_semantics<parallel>, #tpu.dimension_semantics<parallel>], iteration_bounds = array<i64: 1, 1>, scalar_prefetch = 0 : i64, scratch_operands = 0 : i64, tpu.core_type = #tpu.core_type<tc>, window_params = [{transform_indices = @transform_0, window_bounds = array<i64: 8, 32>}, {transform_indices = @transform_1, window_bounds = array<i64: 384, 32>}, {transform_indices = @transform_2, window_bounds = array<i64: 8, 1>}, {transform_indices = @transform_3, window_bounds = array<i64: 1, 384>}, {transform_indices = @transform_4, window_bounds = array<i64: 8, 1>}, {transform_indices = @transform_5, window_bounds = array<i64: 8, 384>}]} {
    %c0 = arith.constant 0 : index
    %c0_0 = arith.constant 0 : index
    %0 = vector.load %arg2[%c0, %c0_0] : memref<8x32xbf16, #tpu.memory_space<vmem>>, vector<8x32xbf16>
    %c0_1 = arith.constant 0 : index
    %c0_2 = arith.constant 0 : index
    %1 = vector.load %arg3[%c0_1, %c0_2] : memref<384x32xbf16, #tpu.memory_space<vmem>>, vector<384x32xbf16>
    %cst = arith.constant dense<0.000000e+00> : vector<8x384xf32>
    %2 = tpu.matmul %0, %1, %cst {dimension_numbers = #tpu.dot_dimension_numbers<[1], [1], [0], [0], [0, 0, 1, 0], [], []>} : vector<8x32xbf16>, vector<384x32xbf16>, vector<8x384xf32> -> vector<8x384xf32>
    %c0_3 = arith.constant 0 : index
    %c0_4 = arith.constant 0 : index
    %3 = vector.load %arg4[%c0_3, %c0_4] : memref<8x1xf32, #tpu.memory_space<vmem>>, vector<8x1xf32>
    %4 = vector.broadcast %3 : vector<8x1xf32> to vector<8x384xf32>
    %5 = arith.mulf %2, %4 : vector<8x384xf32>
    %c0_5 = arith.constant 0 : index
    %c0_6 = arith.constant 0 : index
    %6 = vector.load %arg5[%c0_5, %c0_6] : memref<1x384xf32, #tpu.memory_space<vmem>>, vector<1x384xf32>
    %7 = vector.broadcast %6 : vector<1x384xf32> to vector<8x384xf32>
    %8 = arith.mulf %5, %7 : vector<8x384xf32>
    %c0_7 = arith.constant 0 : index
    %c0_8 = arith.constant 0 : index
    %9 = vector.load %arg6[%c0_7, %c0_8] : memref<8x1xi32, #tpu.memory_space<vmem>>, vector<8x1xi32>
    %c384_i32 = arith.constant 384 : i32
    %10 = arith.muli %arg0, %c384_i32 : i32
    %11 = vector.broadcast %10 : i32 to vector<8x1xi32>
    %12 = arith.subi %9, %11 : vector<8x1xi32>
    %13 = tpu.iota {dimensions = array<i32: 1>} : vector<1x384xi32>
    %14 = vector.broadcast %13 : vector<1x384xi32> to vector<8x384xi32>
    %15 = vector.broadcast %12 : vector<8x1xi32> to vector<8x384xi32>
    %16 = arith.cmpi eq, %14, %15 : vector<8x384xi32>
    %cst_9 = arith.constant 1.200000e+01 : f32
    %cst_10 = arith.constant 0.000000e+00 : f32
    %17 = vector.broadcast %cst_9 : f32 to vector<8x384xf32>
    %18 = vector.broadcast %cst_10 : f32 to vector<8x384xf32>
    %19 = arith.select %16, %17, %18 : vector<8x384xi1>, vector<8x384xf32>
    %20 = arith.subf %8, %19 : vector<8x384xf32>
    %c0_11 = arith.constant 0 : index
    %c0_12 = arith.constant 0 : index
    %21 = vector.load %arg7[%c0_11, %c0_12] : memref<8x384xf32, #tpu.memory_space<vmem>>, vector<8x384xf32>
    tpu.vector_store %arg7[%c0_11, %c0_12], %20 {strides = array<i32>} : memref<8x384xf32, #tpu.memory_space<vmem>>, vector<8x384xf32>,
    return
  }
  func.func @transform_0(%arg0: i32, %arg1: i32) -> (i32, i32) {
    %c0_i32 = arith.constant 0 : i32
    %c0_i32_0 = arith.constant 0 : i32
    return %arg1, %c0_i32 : i32, i32
  }
  func.func @transform_1(%arg0: i32, %arg1: i32) -> (i32, i32) {
    %c0_i32 = arith.constant 0 : i32
    %c0_i32_0 = arith.constant 0 : i32
    return %arg0, %c0_i32 : i32, i32
  }
  func.func @transform_2(%arg0: i32, %arg1: i32) -> (i32, i32) {
    %c0_i32 = arith.constant 0 : i32
    %c0_i32_0 = arith.constant 0 : i32
    return %arg1, %c0_i32 : i32, i32
  }
  func.func @transform_3(%arg0: i32, %arg1: i32) -> (i32, i32) {
    %c0_i32 = arith.constant 0 : i32
    %c0_i32_0 = arith.constant 0 : i32
    return %c0_i32, %arg0 : i32, i32
  }
  func.func @transform_4(%arg0: i32, %arg1: i32) -> (i32, i32) {
    %c0_i32 = arith.constant 0 : i32
    %c0_i32_0 = arith.constant 0 : i32
    return %arg1, %c0_i32 : i32, i32
  }
  func.func @transform_5(%arg0: i32, %arg1: i32) -> (i32, i32) {
    %c0_i32 = arith.constant 0 : i32
    return %arg1, %arg0 : i32, i32
  }
}

</mosaic_0001>

<llo_original>
// kernel: tpu_custom_call.1
$region0: #{tpu_custom_call.1}
  #allocation0 [shape = 'u32[]', space=smem, size = 0x4, offset = 0x4, fixed_abs, tag = 'smem constant byte address 0x4 - core index']
  #allocation1 [shape = 'u32[72,128]{1,0:T(1,128)}', space=vmem, size = 0x9000, scoped, tag = 'internal scratch']
  %s0 = inlined_call_operand.vmem [shape: bf16[8,32], index: 0, kind: input, shape index: {}]
  %s1 = inlined_call_operand.vmem [shape: bf16[384,32], index: 1, kind: input, shape index: {}]
  %s2 = inlined_call_operand.vmem [shape: f32[8,1], index: 2, kind: input, shape index: {}]
  %s3 = inlined_call_operand.vmem [shape: f32[1,384], index: 3, kind: input, shape index: {}]
  %s4 = inlined_call_operand.vmem [shape: s32[8,1], index: 4, kind: input, shape index: {}]
  %s5 = inlined_call_operand.hbm [shape: f32[8,384], index: 5, kind: output, shape index: {}]
  %s6 = sld [smem:[#allocation0]]
  $region30: #{tpu_custom_call.1} parent=0
    _
  %s8 = ssub.s32 1, %s6
  %s9 = scalar_select 0, %s8, %s6
  $region1: #{tpu_custom_call.1} parent=0
    #allocation2 [shape = 'u8[12288]{0}', space=vmem, size = 0x3000, scoped, tag = 'output window, operand 0, single buffered']
    #allocation3 [shape = 's32[1]{0}', space=sflag, size = 0x4, scoped, tag = 'scoped memory for tpu_custom_call.1']
    %10 = vsyncpa [#allocation3], 0
    // Predicated region
    $region2: #{tpu_custom_call.1} parent=1 // pred_check
      _
    $region3: #{tpu_custom_call.1} parent=1 // pred_check_branch
      %12 = sbr.rel (0) target = $region5
    $region4: #{tpu_custom_call.1} parent=1 // pred_region
      _
    $region5: #{tpu_custom_call.1} parent=1 // pred_fallthru
      _
    // Predicated region
    $region6: #{tpu_custom_call.1} parent=1 // pred_check
      _
    $region7: #{tpu_custom_call.1} parent=1 // pred_check_branch
      %14 = sbr.rel (0) target = $region9
    $region8: #{tpu_custom_call.1} parent=1 // pred_region
      _
    $region9: #{tpu_custom_call.1} parent=1 // pred_fallthru
      _
    // Predicated region
    $region10: #{tpu_custom_call.1} parent=1 // pred_check
      _
    $region11: #{tpu_custom_call.1} parent=1 // pred_check_branch
      %16 = sbr.rel (0) target = $region13
    $region12: #{tpu_custom_call.1} parent=1 // pred_region
      _
    $region13: #{tpu_custom_call.1} parent=1 // pred_fallthru
      _
    // Predicated region
    $region14: #{tpu_custom_call.1} parent=1 // pred_check
      _
    $region15: #{tpu_custom_call.1} parent=1 // pred_check_branch
      %18 = sbr.rel (0) target = $region17
    $region16: #{tpu_custom_call.1} parent=1 // pred_region
      _
    $region17: #{tpu_custom_call.1} parent=1 // pred_fallthru
      _
    // Predicated region
    $region18: #{tpu_custom_call.1} parent=1 // pred_check
      _
    $region19: #{tpu_custom_call.1} parent=1 // pred_check_branch
      %20 = sbr.rel (0) target = $region21
    $region20: #{tpu_custom_call.1} parent=1 // pred_region
      _
    $region21: #{tpu_custom_call.1} parent=1 // pred_fallthru
      _
    %v21 = vld [vmem:[%s0] sm:$0xf]
    %v22 = vld [vmem:[%s1] sm:$0xf]
    %v23 = vld [vmem:[%s1 + $0x4] sm:$0xf]
    %v24 = vld [vmem:[%s1 + $0x8] sm:$0xf]
    %v25 = vld [vmem:[%s1 + $0xc] sm:$0xf]
    %v26 = vld [vmem:[%s1 + $0x10] sm:$0xf]
    %v27 = vld [vmem:[%s1 + $0x14] sm:$0xf]
    %v28 = vld [vmem:[%s1 + $0x18] sm:$0xf]
    %v29 = vld [vmem:[%s1 + $0x1c] sm:$0xf]
    %v30 = vld [vmem:[%s1 + $0x20] sm:$0xf]
    %v31 = vld [vmem:[%s1 + $0x24] sm:$0xf]
    %v32 = vld [vmem:[%s1 + $0x28] sm:$0xf]
    %v33 = vld [vmem:[%s1 + $0x2c] sm:$0xf]
    %v34 = vld [vmem:[%s1 + $0x30] sm:$0xf]
    %v35 = vld [vmem:[%s1 + $0x34] sm:$0xf]
    %v36 = vld [vmem:[%s1 + $0x38] sm:$0xf]
    %v37 = vld [vmem:[%s1 + $0x3c] sm:$0xf]
    %v38 = vld [vmem:[%s1 + $0x40] sm:$0xf]
    %v39 = vld [vmem:[%s1 + $0x44] sm:$0xf]
    %v40 = vld [vmem:[%s1 + $0x48] sm:$0xf]
    %v41 = vld [vmem:[%s1 + $0x4c] sm:$0xf]
    %v42 = vld [vmem:[%s1 + $0x50] sm:$0xf]
    %v43 = vld [vmem:[%s1 + $0x54] sm:$0xf]
    %v44 = vld [vmem:[%s1 + $0x58] sm:$0xf]
    %v45 = vld [vmem:[%s1 + $0x5c] sm:$0xf]
    %v46 = vld [vmem:[%s1 + $0x60] sm:$0xf]
    %v47 = vld [vmem:[%s1 + $0x64] sm:$0xf]
    %v48 = vld [vmem:[%s1 + $0x68] sm:$0xf]
    %v49 = vld [vmem:[%s1 + $0x6c] sm:$0xf]
    %v50 = vld [vmem:[%s1 + $0x70] sm:$0xf]
    %v51 = vld [vmem:[%s1 + $0x74] sm:$0xf]
    %v52 = vld [vmem:[%s1 + $0x78] sm:$0xf]
    %v53 = vld [vmem:[%s1 + $0x7c] sm:$0xf]
    %v54 = vld [vmem:[%s1 + $0x80] sm:$0xf]
    %v55 = vld [vmem:[%s1 + $0x84] sm:$0xf]
    %v56 = vld [vmem:[%s1 + $0x88] sm:$0xf]
    %v57 = vld [vmem:[%s1 + $0x8c] sm:$0xf]
    %v58 = vld [vmem:[%s1 + $0x90] sm:$0xf]
    %v59 = vld [vmem:[%s1 + $0x94] sm:$0xf]
    %v60 = vld [vmem:[%s1 + $0x98] sm:$0xf]
    %v61 = vld [vmem:[%s1 + $0x9c] sm:$0xf]
    %v62 = vld [vmem:[%s1 + $0xa0] sm:$0xf]
    %v63 = vld [vmem:[%s1 + $0xa4] sm:$0xf]
    %v64 = vld [vmem:[%s1 + $0xa8] sm:$0xf]
    %v65 = vld [vmem:[%s1 + $0xac] sm:$0xf]
    %v66 = vld [vmem:[%s1 + $0xb0] sm:$0xf]
    %v67 = vld [vmem:[%s1 + $0xb4] sm:$0xf]
    %v68 = vld [vmem:[%s1 + $0xb8] sm:$0xf]
    %v69 = vld [vmem:[%s1 + $0xbc] sm:$0xf]
    %v118 = vunpack.c.l.b16 %v22
    %v119 = vunpack.c.l.b16 %v23
    %v120 = vunpack.c.l.b16 %v24
    %v121 = vunpack.c.l.b16 %v25
    %v122 = vunpack.c.l.b16 %v26
    %v123 = vunpack.c.l.b16 %v27
    %v124 = vunpack.c.l.b16 %v28
    %v125 = vunpack.c.l.b16 %v29
    %v126 = vunpack.c.l.b16 %v30
    %v127 = vunpack.c.l.b16 %v31
    %v128 = vunpack.c.l.b16 %v32
    %v129 = vunpack.c.l.b16 %v33
    %v130 = vunpack.c.l.b16 %v34
    %v131 = vunpack.c.l.b16 %v35
    %v132 = vunpack.c.l.b16 %v36
    %v133 = vunpack.c.l.b16 %v37
    %v134 = vunpack.c.l.b16 %v38
    %v135 = vunpack.c.l.b16 %v39
    %v136 = vunpack.c.l.b16 %v40
    %v137 = vunpack.c.l.b16 %v41
    %v138 = vunpack.c.l.b16 %v42
    %v139 = vunpack.c.l.b16 %v43
    %v140 = vunpack.c.l.b16 %v44
    %v141 = vunpack.c.l.b16 %v45
    %v142 = vunpack.c.l.b16 %v46
    %v143 = vunpack.c.l.b16 %v47
    %v144 = vunpack.c.l.b16 %v48
    %v145 = vunpack.c.l.b16 %v49
    %v146 = vunpack.c.l.b16 %v50
    %v147 = vunpack.c.l.b16 %v51
    %v148 = vunpack.c.l.b16 %v52
    %v149 = vunpack.c.l.b16 %v53
    %v150 = vunpack.c.l.b16 %v54
    %v151 = vunpack.c.l.b16 %v55
    %v152 = vunpack.c.l.b16 %v56
    %v153 = vunpack.c.l.b16 %v57
    %v154 = vunpack.c.l.b16 %v58
    %v155 = vunpack.c.l.b16 %v59
    %v156 = vunpack.c.l.b16 %v60
    %v157 = vunpack.c.l.b16 %v61
    %v158 = vunpack.c.l.b16 %v62
    %v159 = vunpack.c.l.b16 %v63
    %v160 = vunpack.c.l.b16 %v64
    %v161 = vunpack.c.l.b16 %v65
    %v162 = vunpack.c.l.b16 %v66
    %v163 = vunpack.c.l.b16 %v67
    %v164 = vunpack.c.l.b16 %v68
    %v165 = vunpack.c.l.b16 %v69
    %v166 = vpack.c.b16 %v119, %v118
    %v167 = vpack.c.b16 %v121, %v120
    %v168 = vpack.c.b16 %v123, %v122
    %v169 = vpack.c.b16 %v125, %v124
    %v170 = vpack.c.b16 %v127, %v126
    %v171 = vpack.c.b16 %v129, %v128
    %v172 = vpack.c.b16 %v131, %v130
    %v173 = vpack.c.b16 %v133, %v132
    %v174 = vpack.c.b16 %v135, %v134
    %v175 = vpack.c.b16 %v137, %v136
    %v176 = vpack.c.b16 %v139, %v138
    %v177 = vpack.c.b16 %v141, %v140
    %v178 = vpack.c.b16 %v143, %v142
    %v179 = vpack.c.b16 %v145, %v144
    %v180 = vpack.c.b16 %v147, %v146
    %v181 = vpack.c.b16 %v149, %v148
    %v182 = vpack.c.b16 %v151, %v150
    %v183 = vpack.c.b16 %v153, %v152
    %v184 = vpack.c.b16 %v155, %v154
    %v185 = vpack.c.b16 %v157, %v156
    %v186 = vpack.c.b16 %v159, %v158
    %v187 = vpack.c.b16 %v161, %v160
    %v188 = vpack.c.b16 %v163, %v162
    %v189 = vpack.c.b16 %v165, %v164
    %vm190 = vcmask 261120
    %v192 = vsel %vm190, %v21, 0
    %v195 = vsel %vm190, %v166, 0
    %v198 = vsel %vm190, %v167, 0
    %v201 = vsel %vm190, %v168, 0
    %v204 = vsel %vm190, %v169, 0
    %v207 = vsel %vm190, %v170, 0
    %v210 = vsel %vm190, %v171, 0
    %v213 = vsel %vm190, %v172, 0
    %v216 = vsel %vm190, %v173, 0
    %v219 = vsel %vm190, %v174, 0
    %v222 = vsel %vm190, %v175, 0
    %v225 = vsel %vm190, %v176, 0
    %v228 = vsel %vm190, %v177, 0
    %v231 = vsel %vm190, %v178, 0
    %v234 = vsel %vm190, %v179, 0
    %v237 = vsel %vm190, %v180, 0
    %v240 = vsel %vm190, %v181, 0
    %v243 = vsel %vm190, %v182, 0
    %v246 = vsel %vm190, %v183, 0
    %v249 = vsel %vm190, %v184, 0
    %v252 = vsel %vm190, %v185, 0
    %v255 = vsel %vm190, %v186, 0
    %v258 = vsel %vm190, %v187, 0
    %v261 = vsel %vm190, %v188, 0
    %v264 = vsel %vm190, %v189, 0
    %266 = vmatpush.bf16.xpose.msra.mxu0 %v216
    %267 = vmatpush.bf16.xpose.msra.mxu0 %v213
    %268 = vmatpush.bf16.xpose.msra.mxu0 %v210
    %269 = vmatpush.bf16.xpose.msra.mxu0 %v207
    %270 = vmatpush.bf16.xpose.msra.mxu0 %v204
    %271 = vmatpush.bf16.xpose.msra.mxu0 %v201
    %272 = vmatpush.bf16.xpose.msra.mxu0 %v198
    %273 = vmatpush.bf16.xpose.msra.mxu0 %v195
    %274 = vmatmul.bf16.gmra.mxu0 %v192
    %v275 = vpop.f32.mrf.mxu0
    %v276 = vadd.f32 0.0, %v275
    %v277 = vpop.f32.mrf.mxu0
    %278 = vdwg.mxu0
    %279 = vmatpush.bf16.xpose.msra.mxu0 %v240
    %280 = vmatpush.bf16.xpose.msra.mxu0 %v237
    %281 = vmatpush.bf16.xpose.msra.mxu0 %v234
    %282 = vmatpush.bf16.xpose.msra.mxu0 %v231
    %283 = vmatpush.bf16.xpose.msra.mxu0 %v228
    %284 = vmatpush.bf16.xpose.msra.mxu0 %v225
    %285 = vmatpush.bf16.xpose.msra.mxu0 %v222
    %286 = vmatpush.bf16.xpose.msra.mxu0 %v219
    %287 = vmatmul.bf16.gmra.mxu0 %v192
    %v288 = vpop.f32.mrf.mxu0
    %v289 = vadd.f32 0.0, %v288
    %v290 = vpop.f32.mrf.mxu0
    %291 = vdwg.mxu0
    %292 = vmatpush.bf16.xpose.msra.mxu0 %v264
    %293 = vmatpush.bf16.xpose.msra.mxu0 %v261
    %294 = vmatpush.bf16.xpose.msra.mxu0 %v258
    %295 = vmatpush.bf16.xpose.msra.mxu0 %v255
    %296 = vmatpush.bf16.xpose.msra.mxu0 %v252
    %297 = vmatpush.bf16.xpose.msra.mxu0 %v249
    %298 = vmatpush.bf16.xpose.msra.mxu0 %v246
    %299 = vmatpush.bf16.xpose.msra.mxu0 %v243
    %300 = vmatmul.bf16.gmra.mxu0 %v192
    %v301 = vpop.f32.mrf.mxu0
    %v302 = vadd.f32 0.0, %v301
    %v303 = vpop.f32.mrf.mxu0
    %304 = vdwg.mxu0
    %v305 = vld [vmem:[%s2] sm:$0xff]
    %307 = vset.pattern.permute.xlu0 0
    %308 = vperm.xlu0 %307, %v305
    %v309 = vpop.permute.xlu0 %308
    %v311 = vmul.f32 %v276, %v309
    %v312 = vmul.f32 %v289, %v309
    %v313 = vmul.f32 %v302, %v309
    %v314 = vld [vmem:[%s3] sm:$0x7]
    %v316 = vperm.slane %v314, 0
    %v317 = vperm.slane %v314, 1
    %v318 = vperm.slane %v314, 2
    %v322 = vmul.f32 %v311, %v316
    %v323 = vmul.f32 %v312, %v317
    %v324 = vmul.f32 %v313, %v318
    %v325 = vld [vmem:[%s4] sm:$0xff]
    %s326 = smul.u32 0, 384
    %v327 = vstv %s326
    %v328 = vsub.s32 %v325, %v327
    %v329 = vlaneseq
    %v330 = vand.u32 %v329, 127
    %v331 = vadd.s32 %v330, 128
    %v332 = vadd.s32 %v330, 256
    %333 = vset.pattern.permute.xlu0 0
    %334 = vperm.xlu0 %333, %v328
    %v335 = vpop.permute.xlu0 %334
    %vm336 = vcmp.eq.s32.totalorder %v330, %v335
    %vm337 = vcmp.eq.s32.totalorder %v331, %v335
    %vm338 = vcmp.eq.s32.totalorder %v332, %v335
    %v339 = vsel %vm336, 12.0, 0.0
    %v340 = vsel %vm337, 12.0, 0.0
    %v341 = vsel %vm338, 12.0, 0.0
    %v342 = vsub.f32 %v322, %v339
    %v343 = vsub.f32 %v323, %v340
    %v344 = vsub.f32 %v324, %v341
    %345 = vst [vmem:[#allocation2] sm:$0xff] %v342
    %346 = vst [vmem:[#allocation2 + $0x8] sm:$0xff] %v343
    %347 = vst [vmem:[#allocation2 + $0x10] sm:$0xff] %v344
    // Predicated region
    $region22: #{tpu_custom_call.1} parent=1 // pred_check
      _
    $region23: #{tpu_custom_call.1} parent=1 // pred_check_branch
      %349 = sbr.rel (0) target = $region25
    $region24: #{tpu_custom_call.1} parent=1 // pred_region
      %351 = vsyncadd [#allocation3], 0
      %s353 = sshll.u32 [#allocation2], 4
      %s354 = int_to_ptr.vmem [resolvable:$true] %s353
      %s355 = sshll.u32 %s5, 4
      %s356 = int_to_ptr.hbm [resolvable:$true] %s355
      %358 = dma.vmem_to_hbm [thread:$0]  %s354, 384, %s356, [#allocation3]
    $region25: #{tpu_custom_call.1} parent=1 // pred_fallthru
      _
    // Predicated region
    $region26: #{tpu_custom_call.1} parent=1 // pred_check
      _
    $region27: #{tpu_custom_call.1} parent=1 // pred_check_branch
      %360 = sbr.rel (0) target = $region29
    $region28: #{tpu_custom_call.1} parent=1 // pred_region
      %362 = dma.done [#allocation3], 384
    $region29: #{tpu_custom_call.1} parent=1 // pred_fallthru
      _
    %363 = vsyncpa [#allocation3], 1

</llo_original>
